<compile_context>
chip_gen: v7x
topology: tpu7x:2x2x1
jax: 0.10.0
libtpu: 0.0.40
codegen_flags: <defaults>
</compile_context>

<pallas_src>
import jax
import jax.numpy as jnp
from jax.experimental import pallas as pl
from jax.experimental.pallas import tpu as pltpu

# Real layer dims (PyTorch spec) and lane-padded dims used by the kernel.
REAL_DIMS = (3, 32, 64, 128, 16, 2)
PAD_DIMS = (3, 128, 128, 128, 128, 2)

# Batch rows per grid step. At 4096 rows the dominant VMEM term is the
# (4096, 128) f32 intermediate (~2 MiB); total footprint stays well under the
# scoped-VMEM default on v5e/v6e (128 MiB phys) and v7x (64 MiB phys), while
# amortizing the ~0.35 us per-grid-step overhead.
MAX_TILE_B = 4096


def _round_up(n, m):
    return ((n + m - 1) // m) * m


def attack_net_kernel(x_ref,
                      w1_ref, b1_ref,
                      w2_ref, b2_ref,
                      w3_ref, b3_ref,
                      w4_ref, b4_ref,
                      w5_ref, b5_ref,
                      out_ref):
    """Fused forward: 4x (Linear+ReLU) + Linear + 2-class log_softmax.

    Weights are pre-transposed to (in, out) and zero-padded to 128-lane hidden
    widths, so every layer is a plain unmasked `h @ W + b` on the MXU and the
    intermediate h keeps a constant (TILE_B, 128) layout.
    """
    h = x_ref[...].astype(jnp.float32)  # matches `x.float()` in the reference

    h = jnp.maximum(
        jnp.dot(h, w1_ref[...], preferred_element_type=jnp.float32) + b1_ref[...], 0.0)
    h = jnp.maximum(
        jnp.dot(h, w2_ref[...], preferred_element_type=jnp.float32) + b2_ref[...], 0.0)
    h = jnp.maximum(
        jnp.dot(h, w3_ref[...], preferred_element_type=jnp.float32) + b3_ref[...], 0.0)
    h = jnp.maximum(
        jnp.dot(h, w4_ref[...], preferred_element_type=jnp.float32) + b4_ref[...], 0.0)

    # logits: (TILE_B, 2). The last layer is left unpadded so no padded lanes
    # can corrupt the softmax normalizer.
    logits = jnp.dot(h, w5_ref[...], preferred_element_type=jnp.float32) + b5_ref[...]

    # Closed-form 2-class log_softmax, purely elementwise (VPU + EUP slots),
    # no cross-lane max/exp/sum/log reduce over a 2-live-lane vector:
    #   log_softmax_0 = -softplus(l1 - l0)
    #   log_softmax_1 = -softplus(l0 - l1) = (l1 - l0) - softplus(l1 - l0)
    d = logits[:, 1:2] - logits[:, 0:1]                           # (TILE_B, 1)
    sp = jnp.maximum(d, 0.0) + jnp.log1p(jnp.exp(-jnp.abs(d)))    # stable softplus(d)
    out_ref[...] = jnp.concatenate([-sp, d - sp], axis=-1)


@jax.jit
def attack_network_forward(x, params):
    """params = dict with w1..w5 padded to (in_pad, out_pad) and b1..b5 (1, out_pad)."""
    B = x.shape[0]
    tile_b = min(MAX_TILE_B, _round_up(max(B, 1), 8))
    padded_b = _round_up(B, tile_b)
    if padded_b != B:
        # Pad the batch; padded rows are independent (row-wise net + row-wise
        # log_softmax) and are sliced off before returning.
        x = jnp.pad(x, ((0, padded_b - B), (0, 0)))
    num_tiles = padded_b // tile_b

    flat_args = (x,
                 params["w1"], params["b1"],
                 params["w2"], params["b2"],
                 params["w3"], params["b3"],
                 params["w4"], params["b4"],
                 params["w5"], params["b5"])

    # x / out are tiled over the batch; weights & biases stay resident in VMEM
    # across all grid steps (constant index_map).
    in_specs = [pl.BlockSpec((tile_b, PAD_DIMS[0]), lambda i: (i, 0))]
    for a in flat_args[1:]:
        in_specs.append(pl.BlockSpec(a.shape, lambda i: (0, 0)))
    out_spec = pl.BlockSpec((tile_b, PAD_DIMS[-1]), lambda i: (i, 0))

    # Advisory cost for XLA's scheduler around the custom call.
    flops_per_row = 2 * sum(PAD_DIMS[i] * PAD_DIMS[i + 1] for i in range(5))
    weight_bytes = sum(int(a.size) * a.dtype.itemsize for a in flat_args[1:])
    cost = pl.CostEstimate(
        flops=flops_per_row * padded_b,
        transcendentals=2 * padded_b,
        bytes_accessed=padded_b * (PAD_DIMS[0] + PAD_DIMS[-1]) * 4 + weight_bytes)

    out = pl.pallas_call(
        attack_net_kernel,
        out_shape=jax.ShapeDtypeStruct((padded_b, PAD_DIMS[-1]), jnp.float32),
        grid=(num_tiles,),
        in_specs=in_specs,
        out_specs=out_spec,
        compiler_params=pltpu.CompilerParams(
            dimension_semantics=("parallel",),
            vmem_limit_bytes=48 * 1024 * 1024),
        cost_estimate=cost,
    )(*flat_args)
    return out[:B]


def init_params(key):
    """PyTorch-style Linear init: U(-1/sqrt(fan_in), 1/sqrt(fan_in)).

    Returns (kernel_params, ref_params):
      kernel_params: weights transposed to (in, out) and zero-padded to the
                     lane-aligned PAD_DIMS; biases shaped (1, out_pad).
      ref_params:    the same weights at their true shapes, for the pure-JAX
                     reference (validates that the padding scheme is exact).
    """
    kernel_params, ref_params = {}, {}
    for i in range(5):
        fan_in, fan_out = REAL_DIMS[i], REAL_DIMS[i + 1]
        pin, pout = PAD_DIMS[i], PAD_DIMS[i + 1]
        key, kw, kb = jax.random.split(key, 3)
        bound = 1.0 / float(fan_in) ** 0.5
        w = jax.random.uniform(kw, (fan_out, fan_in), jnp.float32, -bound, bound)
        b = jax.random.uniform(kb, (fan_out,), jnp.float32, -bound, bound)
        wt = w.T                                   # (in, out)
        ref_params[f"w{i + 1}"] = wt
        ref_params[f"b{i + 1}"] = b
        kernel_params[f"w{i + 1}"] = (
            jnp.zeros((pin, pout), jnp.float32).at[:fan_in, :fan_out].set(wt))
        kernel_params[f"b{i + 1}"] = (
            jnp.zeros((1, pout), jnp.float32).at[0, :fan_out].set(b))
    return kernel_params, ref_params


def reference_forward(x, ref_params):
    """Pure-JAX reference using the true (unpadded) weights."""
    h = x.astype(jnp.float32)
    for i in range(1, 5):
        h = jnp.maximum(h @ ref_params[f"w{i}"] + ref_params[f"b{i}"], 0.0)
    logits = h @ ref_params["w5"] + ref_params["b5"]
    return jax.nn.log_softmax(logits, axis=-1)


if __name__ == "__main__":
    key = jax.random.PRNGKey(0)
    key, kx1, kx2 = jax.random.split(key, 3)
    kernel_params, ref_params = init_params(key)

    ok = True
    # B=8: single-tile path.  B=13: exercises the padded-tail path (pads to 16).
    for B, kx in ((8, kx1), (13, kx2)):
        x = jax.random.normal(kx, (B, 3), jnp.float32)
        out = attack_network_forward(x, kernel_params)
        jax.block_until_ready(out)
        ref = reference_forward(x, ref_params)
        ok = ok and (out.shape == (B, 2))
        ok = ok and bool(jnp.allclose(out, ref, atol=1e-5, rtol=1e-5))
    assert ok, "mismatch vs reference"
    print("KERNEL_OK")
</pallas_src>

<mosaic_0001>
module attributes {stable_mosaic.version = 11 : i64} {
  func.func @attack_net_kernel(%arg0: i32, %arg1: memref<8x3xf32, #tpu.memory_space<vmem>>, %arg2: memref<3x128xf32, #tpu.memory_space<vmem>>, %arg3: memref<1x128xf32, #tpu.memory_space<vmem>>, %arg4: memref<128x128xf32, #tpu.memory_space<vmem>>, %arg5: memref<1x128xf32, #tpu.memory_space<vmem>>, %arg6: memref<128x128xf32, #tpu.memory_space<vmem>>, %arg7: memref<1x128xf32, #tpu.memory_space<vmem>>, %arg8: memref<128x128xf32, #tpu.memory_space<vmem>>, %arg9: memref<1x128xf32, #tpu.memory_space<vmem>>, %arg10: memref<128x2xf32, #tpu.memory_space<vmem>>, %arg11: memref<1x2xf32, #tpu.memory_space<vmem>>, %arg12: memref<8x2xf32, #tpu.memory_space<vmem>>) attributes {dimension_semantics = [#tpu.dimension_semantics<parallel>], iteration_bounds = array<i64: 1>, scalar_prefetch = 0 : i64, scratch_operands = 0 : i64, tpu.core_type = #tpu.core_type<tc>, window_params = [{transform_indices = @transform_0, window_bounds = array<i64: 8, 3>}, {pipeline_mode = #tpu.pipeline_mode<synchronous>, transform_indices = @transform_1, window_bounds = array<i64: 3, 128>}, {pipeline_mode = #tpu.pipeline_mode<synchronous>, transform_indices = @transform_2, window_bounds = array<i64: 1, 128>}, {pipeline_mode = #tpu.pipeline_mode<synchronous>, transform_indices = @transform_3, window_bounds = array<i64: 128, 128>}, {pipeline_mode = #tpu.pipeline_mode<synchronous>, transform_indices = @transform_4, window_bounds = array<i64: 1, 128>}, {pipeline_mode = #tpu.pipeline_mode<synchronous>, transform_indices = @transform_5, window_bounds = array<i64: 128, 128>}, {pipeline_mode = #tpu.pipeline_mode<synchronous>, transform_indices = @transform_6, window_bounds = array<i64: 1, 128>}, {pipeline_mode = #tpu.pipeline_mode<synchronous>, transform_indices = @transform_7, window_bounds = array<i64: 128, 128>}, {pipeline_mode = #tpu.pipeline_mode<synchronous>, transform_indices = @transform_8, window_bounds = array<i64: 1, 128>}, {pipeline_mode = #tpu.pipeline_mode<synchronous>, transform_indices = @transform_9, window_bounds = array<i64: 128, 2>}, {pipeline_mode = #tpu.pipeline_mode<synchronous>, transform_indices = @transform_10, window_bounds = array<i64: 1, 2>}, {transform_indices = @transform_11, window_bounds = array<i64: 8, 2>}]} {
    %c0 = arith.constant 0 : index
    %c0_0 = arith.constant 0 : index
    %0 = vector.load %arg1[%c0, %c0_0] : memref<8x3xf32, #tpu.memory_space<vmem>>, vector<8x3xf32>
    %c0_1 = arith.constant 0 : index
    %c0_2 = arith.constant 0 : index
    %1 = vector.load %arg2[%c0_1, %c0_2] : memref<3x128xf32, #tpu.memory_space<vmem>>, vector<3x128xf32>
    %cst = arith.constant dense<0.000000e+00> : vector<8x128xf32>
    %2 = tpu.matmul %0, %1, %cst {dimension_numbers = #tpu.dot_dimension_numbers<[1], [0], [0], [1], [0, 0, 1, 1], [], []>} : vector<8x3xf32>, vector<3x128xf32>, vector<8x128xf32> -> vector<8x128xf32>
    %c0_3 = arith.constant 0 : index
    %c0_4 = arith.constant 0 : index
    %3 = vector.load %arg3[%c0_3, %c0_4] : memref<1x128xf32, #tpu.memory_space<vmem>>, vector<1x128xf32>
    %4 = vector.broadcast %3 : vector<1x128xf32> to vector<8x128xf32>
    %5 = arith.addf %2, %4 : vector<8x128xf32>
    %cst_5 = arith.constant 0.000000e+00 : f32
    %6 = vector.broadcast %cst_5 : f32 to vector<8x128xf32>
    %7 = arith.maximumf %5, %6 : vector<8x128xf32>
    %c0_6 = arith.constant 0 : index
    %c0_7 = arith.constant 0 : index
    %8 = vector.load %arg4[%c0_6, %c0_7] : memref<128x128xf32, #tpu.memory_space<vmem>>, vector<128x128xf32>
    %cst_8 = arith.constant dense<0.000000e+00> : vector<8x128xf32>
    %9 = tpu.matmul %7, %8, %cst_8 {dimension_numbers = #tpu.dot_dimension_numbers<[1], [0], [0], [1], [0, 0, 1, 1], [], []>} : vector<8x128xf32>, vector<128x128xf32>, vector<8x128xf32> -> vector<8x128xf32>
    %c0_9 = arith.constant 0 : index
    %c0_10 = arith.constant 0 : index
    %10 = vector.load %arg5[%c0_9, %c0_10] : memref<1x128xf32, #tpu.memory_space<vmem>>, vector<1x128xf32>
    %11 = vector.broadcast %10 : vector<1x128xf32> to vector<8x128xf32>
    %12 = arith.addf %9, %11 : vector<8x128xf32>
    %cst_11 = arith.constant 0.000000e+00 : f32
    %13 = vector.broadcast %cst_11 : f32 to vector<8x128xf32>
    %14 = arith.maximumf %12, %13 : vector<8x128xf32>
    %c0_12 = arith.constant 0 : index
    %c0_13 = arith.constant 0 : index
    %15 = vector.load %arg6[%c0_12, %c0_13] : memref<128x128xf32, #tpu.memory_space<vmem>>, vector<128x128xf32>
    %cst_14 = arith.constant dense<0.000000e+00> : vector<8x128xf32>
    %16 = tpu.matmul %14, %15, %cst_14 {dimension_numbers = #tpu.dot_dimension_numbers<[1], [0], [0], [1], [0, 0, 1, 1], [], []>} : vector<8x128xf32>, vector<128x128xf32>, vector<8x128xf32> -> vector<8x128xf32>
    %c0_15 = arith.constant 0 : index
    %c0_16 = arith.constant 0 : index
    %17 = vector.load %arg7[%c0_15, %c0_16] : memref<1x128xf32, #tpu.memory_space<vmem>>, vector<1x128xf32>
    %18 = vector.broadcast %17 : vector<1x128xf32> to vector<8x128xf32>
    %19 = arith.addf %16, %18 : vector<8x128xf32>
    %cst_17 = arith.constant 0.000000e+00 : f32
    %20 = vector.broadcast %cst_17 : f32 to vector<8x128xf32>
    %21 = arith.maximumf %19, %20 : vector<8x128xf32>
    %c0_18 = arith.constant 0 : index
    %c0_19 = arith.constant 0 : index
    %22 = vector.load %arg8[%c0_18, %c0_19] : memref<128x128xf32, #tpu.memory_space<vmem>>, vector<128x128xf32>
    %cst_20 = arith.constant dense<0.000000e+00> : vector<8x128xf32>
    %23 = tpu.matmul %21, %22, %cst_20 {dimension_numbers = #tpu.dot_dimension_numbers<[1], [0], [0], [1], [0, 0, 1, 1], [], []>} : vector<8x128xf32>, vector<128x128xf32>, vector<8x128xf32> -> vector<8x128xf32>
    %c0_21 = arith.constant 0 : index
    %c0_22 = arith.constant 0 : index
    %24 = vector.load %arg9[%c0_21, %c0_22] : memref<1x128xf32, #tpu.memory_space<vmem>>, vector<1x128xf32>
    %25 = vector.broadcast %24 : vector<1x128xf32> to vector<8x128xf32>
    %26 = arith.addf %23, %25 : vector<8x128xf32>
    %cst_23 = arith.constant 0.000000e+00 : f32
    %27 = vector.broadcast %cst_23 : f32 to vector<8x128xf32>
    %28 = arith.maximumf %26, %27 : vector<8x128xf32>
    %c0_24 = arith.constant 0 : index
    %c0_25 = arith.constant 0 : index
    %29 = vector.load %arg10[%c0_24, %c0_25] : memref<128x2xf32, #tpu.memory_space<vmem>>, vector<128x2xf32>
    %cst_26 = arith.constant dense<0.000000e+00> : vector<8x2xf32>
    %30 = tpu.matmul %28, %29, %cst_26 {dimension_numbers = #tpu.dot_dimension_numbers<[1], [0], [0], [1], [0, 0, 1, 1], [], []>} : vector<8x128xf32>, vector<128x2xf32>, vector<8x2xf32> -> vector<8x2xf32>
    %c0_27 = arith.constant 0 : index
    %c0_28 = arith.constant 0 : index
    %31 = vector.load %arg11[%c0_27, %c0_28] : memref<1x2xf32, #tpu.memory_space<vmem>>, vector<1x2xf32>
    %32 = vector.broadcast %31 : vector<1x2xf32> to vector<8x2xf32>
    %33 = arith.addf %30, %32 : vector<8x2xf32>
    %34 = vector.extract_strided_slice %33 {offsets = [0, 1], sizes = [8, 1], strides = [1, 1]} : vector<8x2xf32> to vector<8x1xf32>
    %35 = vector.extract_strided_slice %33 {offsets = [0, 0], sizes = [8, 1], strides = [1, 1]} : vector<8x2xf32> to vector<8x1xf32>
    %36 = arith.subf %34, %35 : vector<8x1xf32>
    %cst_29 = arith.constant 0.000000e+00 : f32
    %37 = vector.broadcast %cst_29 : f32 to vector<8x1xf32>
    %38 = arith.maximumf %36, %37 : vector<8x1xf32>
    %39 = math.absf %36 : vector<8x1xf32>
    %cst_30 = arith.constant 0.000000e+00 : f32
    %40 = vector.broadcast %cst_30 : f32 to vector<8x1xf32>
    %41 = arith.subf %40, %39 : vector<8x1xf32>
    %42 = math.exp %41 : vector<8x1xf32>
    %43 = math.log1p %42 : vector<8x1xf32>
    %44 = arith.addf %38, %43 : vector<8x1xf32>
    %cst_31 = arith.constant 0.000000e+00 : f32
    %45 = vector.broadcast %cst_31 : f32 to vector<8x1xf32>
    %46 = arith.subf %45, %44 : vector<8x1xf32>
    %47 = arith.subf %36, %44 : vector<8x1xf32>
    %48 = tpu.concatenate %46, %47 in 1 : vector<8x1xf32>, vector<8x1xf32> -> vector<8x2xf32>
    %c0_32 = arith.constant 0 : index
    %c0_33 = arith.constant 0 : index
    %49 = vector.load %arg12[%c0_32, %c0_33] : memref<8x2xf32, #tpu.memory_space<vmem>>, vector<8x2xf32>
    tpu.vector_store %arg12[%c0_32, %c0_33], %48 {strides = array<i32>} : memref<8x2xf32, #tpu.memory_space<vmem>>, vector<8x2xf32>,
    return
  }
  func.func @transform_0(%arg0: i32) -> (i32, i32) {
    %c0_i32 = arith.constant 0 : i32
    %c0_i32_0 = arith.constant 0 : i32
    return %arg0, %c0_i32 : i32, i32
  }
  func.func @transform_1(%arg0: i32) -> (i32, i32) {
    %c0_i32 = arith.constant 0 : i32
    %c0_i32_0 = arith.constant 0 : i32
    %c0_i32_1 = arith.constant 0 : i32
    return %c0_i32, %c0_i32_0 : i32, i32
  }
  func.func @transform_2(%arg0: i32) -> (i32, i32) {
    %c0_i32 = arith.constant 0 : i32
    %c0_i32_0 = arith.constant 0 : i32
    %c0_i32_1 = arith.constant 0 : i32
    return %c0_i32, %c0_i32_0 : i32, i32
  }
  func.func @transform_3(%arg0: i32) -> (i32, i32) {
    %c0_i32 = arith.constant 0 : i32
    %c0_i32_0 = arith.constant 0 : i32
    %c0_i32_1 = arith.constant 0 : i32
    return %c0_i32, %c0_i32_0 : i32, i32
  }
  func.func @transform_4(%arg0: i32) -> (i32, i32) {
    %c0_i32 = arith.constant 0 : i32
    %c0_i32_0 = arith.constant 0 : i32
    %c0_i32_1 = arith.constant 0 : i32
    return %c0_i32, %c0_i32_0 : i32, i32
  }
  func.func @transform_5(%arg0: i32) -> (i32, i32) {
    %c0_i32 = arith.constant 0 : i32
    %c0_i32_0 = arith.constant 0 : i32
    %c0_i32_1 = arith.constant 0 : i32
    return %c0_i32, %c0_i32_0 : i32, i32
  }
  func.func @transform_6(%arg0: i32) -> (i32, i32) {
    %c0_i32 = arith.constant 0 : i32
    %c0_i32_0 = arith.constant 0 : i32
    %c0_i32_1 = arith.constant 0 : i32
    return %c0_i32, %c0_i32_0 : i32, i32
  }
  func.func @transform_7(%arg0: i32) -> (i32, i32) {
    %c0_i32 = arith.constant 0 : i32
    %c0_i32_0 = arith.constant 0 : i32
    %c0_i32_1 = arith.constant 0 : i32
    return %c0_i32, %c0_i32_0 : i32, i32
  }
  func.func @transform_8(%arg0: i32) -> (i32, i32) {
    %c0_i32 = arith.constant 0 : i32
    %c0_i32_0 = arith.constant 0 : i32
    %c0_i32_1 = arith.constant 0 : i32
    return %c0_i32, %c0_i32_0 : i32, i32
  }
  func.func @transform_9(%arg0: i32) -> (i32, i32) {
    %c0_i32 = arith.constant 0 : i32
    %c0_i32_0 = arith.constant 0 : i32
    %c0_i32_1 = arith.constant 0 : i32
    return %c0_i32, %c0_i32_0 : i32, i32
  }
  func.func @transform_10(%arg0: i32) -> (i32, i32) {
    %c0_i32 = arith.constant 0 : i32
    %c0_i32_0 = arith.constant 0 : i32
    %c0_i32_1 = arith.constant 0 : i32
    return %c0_i32, %c0_i32_0 : i32, i32
  }
  func.func @transform_11(%arg0: i32) -> (i32, i32) {
    %c0_i32 = arith.constant 0 : i32
    %c0_i32_0 = arith.constant 0 : i32
    return %arg0, %c0_i32 : i32, i32
  }
}

</mosaic_0001>

<llo_original>
// kernel: attack_network_forward.1
$region0: #{attack_network_forward.1}
  #allocation0 [shape = 'u32[]', space=smem, size = 0x4, offset = 0x4, fixed_abs, tag = 'smem constant byte address 0x4 - core index']
  #allocation1 [shape = 'u32[144,128]{1,0:T(1,128)}', space=vmem, size = 0x12000, scoped, tag = 'internal scratch']
  %s0 = inlined_call_operand.vmem [shape: f32[8,3], index: 0, kind: input, shape index: {}]
  %s1 = inlined_call_operand.vmem [shape: f32[3,128], index: 1, kind: input, shape index: {}]
  %s2 = inlined_call_operand.vmem [shape: f32[1,128], index: 2, kind: input, shape index: {}]
  %s3 = inlined_call_operand.vmem [shape: f32[128,128], index: 3, kind: input, shape index: {}]
  %s4 = inlined_call_operand.vmem [shape: f32[1,128], index: 4, kind: input, shape index: {}]
  %s5 = inlined_call_operand.hbm [shape: f32[128,128], index: 5, kind: input, shape index: {}]
  %s6 = inlined_call_operand.vmem [shape: f32[1,128], index: 6, kind: input, shape index: {}]
  %s7 = inlined_call_operand.hbm [shape: f32[128,128], index: 7, kind: input, shape index: {}]
  %s8 = inlined_call_operand.vmem [shape: f32[1,128], index: 8, kind: input, shape index: {}]
  %s9 = inlined_call_operand.vmem [shape: f32[128,2], index: 9, kind: input, shape index: {}]
  %s10 = inlined_call_operand.vmem [shape: f32[1,2], index: 10, kind: input, shape index: {}]
  %s11 = inlined_call_operand.vmem [shape: f32[8,2], index: 11, kind: output, shape index: {}]
  %s12 = sld [smem:[#allocation0]]
  $region62: #{attack_network_forward.1} parent=0
    _
  %s14 = ssub.s32 1, %s12
  %s15 = scalar_select 0, %s14, %s12
  $region1: #{attack_network_forward.1} parent=0
    #allocation2 [shape = 'u8[65536]{0}', space=vmem, size = 0x10000, scoped, tag = 'input window, operand 5, single buffered']
    #allocation3 [shape = 's32[1]{0}', space=sflag, size = 0x4, scoped, tag = 'scoped memory for attack_network_forward.1']
    #allocation4 [shape = 'u8[65536]{0}', space=vmem, size = 0x10000, scoped, tag = 'input window, operand 7, single buffered']
    #allocation5 [shape = 's32[1]{0}', space=sflag, size = 0x4, scoped, tag = 'scoped memory for attack_network_forward.1']
    %16 = vsyncpa [#allocation3], 0
    %17 = vsyncpa [#allocation5], 0
    // Predicated region
    $region2: #{attack_network_forward.1} parent=1 // pred_check
      _
    $region3: #{attack_network_forward.1} parent=1 // pred_check_branch
      %19 = sbr.rel (0) target = $region5
    $region4: #{attack_network_forward.1} parent=1 // pred_region
      _
    $region5: #{attack_network_forward.1} parent=1 // pred_fallthru
      _
    // Predicated region
    $region6: #{attack_network_forward.1} parent=1 // pred_check
      _
    $region7: #{attack_network_forward.1} parent=1 // pred_check_branch
      %21 = sbr.rel (0) target = $region9
    $region8: #{attack_network_forward.1} parent=1 // pred_region
      _
    $region9: #{attack_network_forward.1} parent=1 // pred_fallthru
      _
    // Predicated region
    $region10: #{attack_network_forward.1} parent=1 // pred_check
      _
    $region11: #{attack_network_forward.1} parent=1 // pred_check_branch
      %23 = sbr.rel (0) target = $region13
    $region12: #{attack_network_forward.1} parent=1 // pred_region
      _
    $region13: #{attack_network_forward.1} parent=1 // pred_fallthru
      _
    // Predicated region
    $region14: #{attack_network_forward.1} parent=1 // pred_check
      _
    $region15: #{attack_network_forward.1} parent=1 // pred_check_branch
      %25 = sbr.rel (0) target = $region17
    $region16: #{attack_network_forward.1} parent=1 // pred_region
      _
    $region17: #{attack_network_forward.1} parent=1 // pred_fallthru
      _
    // Predicated region
    $region18: #{attack_network_forward.1} parent=1 // pred_check
      _
    $region19: #{attack_network_forward.1} parent=1 // pred_check_branch
      %27 = sbr.rel (0) target = $region21
    $region20: #{attack_network_forward.1} parent=1 // pred_region
      _
    $region21: #{attack_network_forward.1} parent=1 // pred_fallthru
      _
    // Predicated region
    $region22: #{attack_network_forward.1} parent=1 // pred_check
      _
    $region23: #{attack_network_forward.1} parent=1 // pred_check_branch
      %29 = sbr.rel (0) target = $region25
    $region24: #{attack_network_forward.1} parent=1 // pred_region
      %s31 = ssub.s32 2048, 2048
      %32 = vsyncadd [#allocation3], %s31
      %s33 = sshll.u32 [#allocation2], 4
      %s34 = int_to_ptr.vmem [resolvable:$true] %s33
      %39 = dma.hbm_to_vmem [thread:$0]  %s5, 2048, %s34, [#allocation3], 128, 128, 8
    $region25: #{attack_network_forward.1} parent=1 // pred_fallthru
      _
    // Predicated region
    $region26: #{attack_network_forward.1} parent=1 // pred_check
      _
    $region27: #{attack_network_forward.1} parent=1 // pred_check_branch
      %41 = sbr.rel (0) target = $region29
    $region28: #{attack_network_forward.1} parent=1 // pred_region
      _
    $region29: #{attack_network_forward.1} parent=1 // pred_fallthru
      _
    // Predicated region
    $region30: #{attack_network_forward.1} parent=1 // pred_check
      _
    $region31: #{attack_network_forward.1} parent=1 // pred_check_branch
      %43 = sbr.rel (0) target = $region33
    $region32: #{attack_network_forward.1} parent=1 // pred_region
      %s45 = ssub.s32 2048, 2048
      %46 = vsyncadd [#allocation5], %s45
      %s47 = sshll.u32 [#allocation4], 4
      %s48 = int_to_ptr.vmem [resolvable:$true] %s47
      %53 = dma.hbm_to_vmem [thread:$0]  %s7, 2048, %s48, [#allocation5], 128, 128, 8
    $region33: #{attack_network_forward.1} parent=1 // pred_fallthru
      _
    // Predicated region
    $region34: #{attack_network_forward.1} parent=1 // pred_check
      _
    $region35: #{attack_network_forward.1} parent=1 // pred_check_branch
      %55 = sbr.rel (0) target = $region37
    $region36: #{attack_network_forward.1} parent=1 // pred_region
      _
    $region37: #{attack_network_forward.1} parent=1 // pred_fallthru
      _
    // Predicated region
    $region38: #{attack_network_forward.1} parent=1 // pred_check
      _
    $region39: #{attack_network_forward.1} parent=1 // pred_check_branch
      %57 = sbr.rel (0) target = $region41
    $region40: #{attack_network_forward.1} parent=1 // pred_region
      _
    $region41: #{attack_network_forward.1} parent=1 // pred_fallthru
      _
    // Predicated region
    $region42: #{attack_network_forward.1} parent=1 // pred_check
      _
    $region43: #{attack_network_forward.1} parent=1 // pred_check_branch
      %59 = sbr.rel (0) target = $region45
    $region44: #{attack_network_forward.1} parent=1 // pred_region
      _
    $region45: #{attack_network_forward.1} parent=1 // pred_fallthru
      _
    // Predicated region
    $region46: #{attack_network_forward.1} parent=1 // pred_check
      _
    $region47: #{attack_network_forward.1} parent=1 // pred_check_branch
      %61 = sbr.rel (0) target = $region49
    $region48: #{attack_network_forward.1} parent=1 // pred_region
      %62 = dma.done [#allocation3], 2048
    $region49: #{attack_network_forward.1} parent=1 // pred_fallthru
      _
    // Predicated region
    $region50: #{attack_network_forward.1} parent=1 // pred_check
      _
    $region51: #{attack_network_forward.1} parent=1 // pred_check_branch
      %64 = sbr.rel (0) target = $region53
    $region52: #{attack_network_forward.1} parent=1 // pred_region
      %65 = dma.done [#allocation5], 2048
    $region53: #{attack_network_forward.1} parent=1 // pred_fallthru
      _
    %v66 = vld [vmem:[%s0] sm:$0xff]
    %v67 = vld [vmem:[%s1] sm:$0x7]
    %v68 = vld [vmem:[%s2] sm:$0x1]
    %v70 = vlaneseq
    %v71 = vshrl.u32 %v70, 7
    %v72 = vsub.s32 0, %v71
    %v73 = vrot.slane %v68, %v72
    %vm75 = vcmask 23552
    %v77 = vsel %vm75, %v66, 0
    %vm79 = vcmask 1042432
    %v81 = vsel %vm79, %v67, 0
    %83 = vmatprep.subr.mxu0 0.0
    %84 = vmatpush1.msra.mxu0 %v81
    %85 = vmatprep.subr.mxu0 0.0
    %86 = vmatpush1.msra.mxu0 0.0
    %87 = vmatprep.subr.mxu0 0.0
    %88 = vmatpush1.msra.mxu0 0.0
    %89 = vmatprep.subr.mxu0 0.0
    %90 = vmatpush1.msra.mxu0 0.0
    %91 = vmatprep.subr.mxu0 0.0
    %92 = vmatpush1.msra.mxu0 0.0
    %93 = vmatprep.subr.mxu0 0.0
    %94 = vmatpush1.msra.mxu0 0.0
    %95 = vmatprep.subr.mxu0 0.0
    %96 = vmatpush1.msra.mxu0 0.0
    %97 = vmatprep.subr.mxu0 0.0
    %98 = vmatpush1.msra.mxu0 0.0
    %99 = vmatprep.subr.mxu0 0.0
    %100 = vmatpush1.msra.mxu0 0.0
    %101 = vmatprep.subr.mxu0 0.0
    %102 = vmatpush1.msra.mxu0 0.0
    %103 = vmatprep.subr.mxu0 0.0
    %104 = vmatpush1.msra.mxu0 0.0
    %105 = vmatprep.subr.mxu0 0.0
    %106 = vmatpush1.msra.mxu0 0.0
    %107 = vmatprep.subr.mxu0 0.0
    %108 = vmatpush1.msra.mxu0 0.0
    %109 = vmatprep.subr.mxu0 0.0
    %110 = vmatpush1.msra.mxu0 0.0
    %111 = vmatprep.subr.mxu0 0.0
    %112 = vmatpush1.msra.mxu0 0.0
    %113 = vmatprep.subr.mxu0 0.0
    %114 = vmatpush1.msra.mxu0 0.0
    %115 = vmatprep.subr.mxu0 0.0
    %116 = vmatpush1.msra.mxu0 0.0
    %117 = vmatprep.subr.mxu0 0.0
    %118 = vmatpush1.msra.mxu0 0.0
    %119 = vmatprep.subr.mxu0 0.0
    %120 = vmatpush1.msra.mxu0 0.0
    %121 = vmatprep.subr.mxu0 0.0
    %122 = vmatpush1.msra.mxu0 0.0
    %123 = vmatprep.subr.mxu0 0.0
    %124 = vmatpush1.msra.mxu0 0.0
    %125 = vmatprep.subr.mxu0 0.0
    %126 = vmatpush1.msra.mxu0 0.0
    %127 = vmatprep.subr.mxu0 0.0
    %128 = vmatpush1.msra.mxu0 0.0
    %129 = vmatprep.subr.mxu0 0.0
    %130 = vmatpush1.msra.mxu0 0.0
    %131 = vmatprep.subr.mxu0 0.0
    %132 = vmatpush1.msra.mxu0 0.0
    %133 = vmatprep.subr.mxu0 0.0
    %134 = vmatpush1.msra.mxu0 0.0
    %135 = vmatprep.subr.mxu0 0.0
    %136 = vmatpush1.msra.mxu0 0.0
    %137 = vmatprep.subr.mxu0 0.0
    %138 = vmatpush1.msra.mxu0 0.0
    %139 = vmatprep.subr.mxu0 0.0
    %140 = vmatpush1.msra.mxu0 0.0
    %141 = vmatprep.subr.mxu0 0.0
    %142 = vmatpush1.msra.mxu0 0.0
    %143 = vmatprep.subr.mxu0 0.0
    %144 = vmatpush1.msra.mxu0 0.0
    %145 = vmatprep.subr.mxu0 0.0
    %146 = vmatpush1.msra.mxu0 0.0
    %147 = vmatprep.mubr.f32.mxu0 0.0
    %148 = vmatmul.mubr.f32.gmra.mrb[0].mxu0 %v77
    %v149 = vpop.f32.mrb[0].mxu0
    %v150 = vadd.f32 %v73, %v149
    %v151 = vpop.f32.mrb[0].mxu0
    %152 = vdwg.mxu0
    %v153 = vmax.f32 %v150, 0.0
    %v154 = vld [vmem:[%s3] sm:$0xff]
    %v155 = vld [vmem:[%s3 + $0x8] sm:$0xff]
    %v156 = vld [vmem:[%s3 + $0x10] sm:$0xff]
    %v157 = vld [vmem:[%s3 + $0x18] sm:$0xff]
    %v158 = vld [vmem:[%s3 + $0x20] sm:$0xff]
    %v159 = vld [vmem:[%s3 + $0x28] sm:$0xff]
    %v160 = vld [vmem:[%s3 + $0x30] sm:$0xff]
    %v161 = vld [vmem:[%s3 + $0x38] sm:$0xff]
    %v162 = vld [vmem:[%s3 + $0x40] sm:$0xff]
    %v163 = vld [vmem:[%s3 + $0x48] sm:$0xff]
    %v164 = vld [vmem:[%s3 + $0x50] sm:$0xff]
    %v165 = vld [vmem:[%s3 + $0x58] sm:$0xff]
    %v166 = vld [vmem:[%s3 + $0x60] sm:$0xff]
    %v167 = vld [vmem:[%s3 + $0x68] sm:$0xff]
    %v168 = vld [vmem:[%s3 + $0x70] sm:$0xff]
    %v169 = vld [vmem:[%s3 + $0x78] sm:$0xff]
    %v170 = vld [vmem:[%s4] sm:$0x1]
    %v172 = vlaneseq
    %v173 = vshrl.u32 %v172, 7
    %v174 = vsub.s32 0, %v173
    %v175 = vrot.slane %v170, %v174
    %177 = vmatprep.subr.mxu0 0.0
    %178 = vmatpush1.msra.mxu0 %v154
    %179 = vmatprep.subr.mxu0 0.0
    %180 = vmatpush1.msra.mxu0 %v155
    %181 = vmatprep.subr.mxu0 0.0
    %182 = vmatpush1.msra.mxu0 %v156
    %183 = vmatprep.subr.mxu0 0.0
    %184 = vmatpush1.msra.mxu0 %v157
    %185 = vmatprep.subr.mxu0 0.0
    %186 = vmatpush1.msra.mxu0 %v158
    %187 = vmatprep.subr.mxu0 0.0
    %188 = vmatpush1.msra.mxu0 %v159
    %189 = vmatprep.subr.mxu0 0.0
    %190 = vmatpush1.msra.mxu0 %v160
    %191 = vmatprep.subr.mxu0 0.0
    %192 = vmatpush1.msra.mxu0 %v161
    %193 = vmatprep.subr.mxu0 0.0
    %194 = vmatpush1.msra.mxu0 %v162
    %195 = vmatprep.subr.mxu0 0.0
    %196 = vmatpush1.msra.mxu0 %v163
    %197 = vmatprep.subr.mxu0 0.0
    %198 = vmatpush1.msra.mxu0 %v164
    %199 = vmatprep.subr.mxu0 0.0
    %200 = vmatpush1.msra.mxu0 %v165
    %201 = vmatprep.subr.mxu0 0.0
    %202 = vmatpush1.msra.mxu0 %v166
    %203 = vmatprep.subr.mxu0 0.0
    %204 = vmatpush1.msra.mxu0 %v167
    %205 = vmatprep.subr.mxu0 0.0
    %206 = vmatpush1.msra.mxu0 %v168
    %207 = vmatprep.subr.mxu0 0.0
    %208 = vmatpush1.msra.mxu0 %v169
    %209 = vmatprep.subr.mxu0 0.0
    %210 = vmatpush1.msra.mxu0 0.0
    %211 = vmatprep.subr.mxu0 0.0
    %212 = vmatpush1.msra.mxu0 0.0
    %213 = vmatprep.subr.mxu0 0.0
    %214 = vmatpush1.msra.mxu0 0.0
    %215 = vmatprep.subr.mxu0 0.0
    %216 = vmatpush1.msra.mxu0 0.0
    %217 = vmatprep.subr.mxu0 0.0
    %218 = vmatpush1.msra.mxu0 0.0
    %219 = vmatprep.subr.mxu0 0.0
    %220 = vmatpush1.msra.mxu0 0.0
    %221 = vmatprep.subr.mxu0 0.0
    %222 = vmatpush1.msra.mxu0 0.0
    %223 = vmatprep.subr.mxu0 0.0
    %224 = vmatpush1.msra.mxu0 0.0
    %225 = vmatprep.subr.mxu0 0.0
    %226 = vmatpush1.msra.mxu0 0.0
    %227 = vmatprep.subr.mxu0 0.0
    %228 = vmatpush1.msra.mxu0 0.0
    %229 = vmatprep.subr.mxu0 0.0
    %230 = vmatpush1.msra.mxu0 0.0
    %231 = vmatprep.subr.mxu0 0.0
    %232 = vmatpush1.msra.mxu0 0.0
    %233 = vmatprep.subr.mxu0 0.0
    %234 = vmatpush1.msra.mxu0 0.0
    %235 = vmatprep.subr.mxu0 0.0
    %236 = vmatpush1.msra.mxu0 0.0
    %237 = vmatprep.subr.mxu0 0.0
    %238 = vmatpush1.msra.mxu0 0.0
    %239 = vmatprep.subr.mxu0 0.0
    %240 = vmatpush1.msra.mxu0 0.0
    %241 = vmatprep.mubr.f32.mxu0 0.0
    %242 = vmatmul.mubr.f32.gmra.mrb[0].mxu0 %v153
    %v243 = vpop.f32.mrb[0].mxu0
    %v244 = vadd.f32 %v175, %v243
    %v245 = vpop.f32.mrb[0].mxu0
    %246 = vdwg.mxu0
    %v247 = vmax.f32 %v244, 0.0
    %v248 = vld [vmem:[#allocation2] sm:$0xff]
    %v249 = vld [vmem:[#allocation2 + $0x8] sm:$0xff]
    %v250 = vld [vmem:[#allocation2 + $0x10] sm:$0xff]
    %v251 = vld [vmem:[#allocation2 + $0x18] sm:$0xff]
    %v252 = vld [vmem:[#allocation2 + $0x20] sm:$0xff]
    %v253 = vld [vmem:[#allocation2 + $0x28] sm:$0xff]
    %v254 = vld [vmem:[#allocation2 + $0x30] sm:$0xff]
    %v255 = vld [vmem:[#allocation2 + $0x38] sm:$0xff]
    %v256 = vld [vmem:[#allocation2 + $0x40] sm:$0xff]
    %v257 = vld [vmem:[#allocation2 + $0x48] sm:$0xff]
    %v258 = vld [vmem:[#allocation2 + $0x50] sm:$0xff]
    %v259 = vld [vmem:[#allocation2 + $0x58] sm:$0xff]
    %v260 = vld [vmem:[#allocation2 + $0x60] sm:$0xff]
    %v261 = vld [vmem:[#allocation2 + $0x68] sm:$0xff]
    %v262 = vld [vmem:[#allocation2 + $0x70] sm:$0xff]
    %v263 = vld [vmem:[#allocation2 + $0x78] sm:$0xff]
    %v264 = vld [vmem:[%s6] sm:$0x1]
    %v266 = vlaneseq
    %v267 = vshrl.u32 %v266, 7
    %v268 = vsub.s32 0, %v267
    %v269 = vrot.slane %v264, %v268
    %271 = vmatprep.subr.mxu0 0.0
    %272 = vmatpush1.msra.mxu0 %v248
    %273 = vmatprep.subr.mxu0 0.0
    %274 = vmatpush1.msra.mxu0 %v249
    %275 = vmatprep.subr.mxu0 0.0
    %276 = vmatpush1.msra.mxu0 %v250
    %277 = vmatprep.subr.mxu0 0.0
    %278 = vmatpush1.msra.mxu0 %v251
    %279 = vmatprep.subr.mxu0 0.0
    %280 = vmatpush1.msra.mxu0 %v252
    %281 = vmatprep.subr.mxu0 0.0
    %282 = vmatpush1.msra.mxu0 %v253
    %283 = vmatprep.subr.mxu0 0.0
    %284 = vmatpush1.msra.mxu0 %v254
    %285 = vmatprep.subr.mxu0 0.0
    %286 = vmatpush1.msra.mxu0 %v255
    %287 = vmatprep.subr.mxu0 0.0
    %288 = vmatpush1.msra.mxu0 %v256
    %289 = vmatprep.subr.mxu0 0.0
    %290 = vmatpush1.msra.mxu0 %v257
    %291 = vmatprep.subr.mxu0 0.0
    %292 = vmatpush1.msra.mxu0 %v258
    %293 = vmatprep.subr.mxu0 0.0
    %294 = vmatpush1.msra.mxu0 %v259
    %295 = vmatprep.subr.mxu0 0.0
    %296 = vmatpush1.msra.mxu0 %v260
    %297 = vmatprep.subr.mxu0 0.0
    %298 = vmatpush1.msra.mxu0 %v261
    %299 = vmatprep.subr.mxu0 0.0
    %300 = vmatpush1.msra.mxu0 %v262
    %301 = vmatprep.subr.mxu0 0.0
    %302 = vmatpush1.msra.mxu0 %v263
    %303 = vmatprep.subr.mxu0 0.0
    %304 = vmatpush1.msra.mxu0 0.0
    %305 = vmatprep.subr.mxu0 0.0
    %306 = vmatpush1.msra.mxu0 0.0
    %307 = vmatprep.subr.mxu0 0.0
    %308 = vmatpush1.msra.mxu0 0.0
    %309 = vmatprep.subr.mxu0 0.0
    %310 = vmatpush1.msra.mxu0 0.0
    %311 = vmatprep.subr.mxu0 0.0
    %312 = vmatpush1.msra.mxu0 0.0
    %313 = vmatprep.subr.mxu0 0.0
    %314 = vmatpush1.msra.mxu0 0.0
    %315 = vmatprep.subr.mxu0 0.0
    %316 = vmatpush1.msra.mxu0 0.0
    %317 = vmatprep.subr.mxu0 0.0
    %318 = vmatpush1.msra.mxu0 0.0
    %319 = vmatprep.subr.mxu0 0.0
    %320 = vmatpush1.msra.mxu0 0.0
    %321 = vmatprep.subr.mxu0 0.0
    %322 = vmatpush1.msra.mxu0 0.0
    %323 = vmatprep.subr.mxu0 0.0
    %324 = vmatpush1.msra.mxu0 0.0
    %325 = vmatprep.subr.mxu0 0.0
    %326 = vmatpush1.msra.mxu0 0.0
    %327 = vmatprep.subr.mxu0 0.0
    %328 = vmatpush1.msra.mxu0 0.0
    %329 = vmatprep.subr.mxu0 0.0
    %330 = vmatpush1.msra.mxu0 0.0
    %331 = vmatprep.subr.mxu0 0.0
    %332 = vmatpush1.msra.mxu0 0.0
    %333 = vmatprep.subr.mxu0 0.0
    %334 = vmatpush1.msra.mxu0 0.0
    %335 = vmatprep.mubr.f32.mxu0 0.0
    %336 = vmatmul.mubr.f32.gmra.mrb[0].mxu0 %v247
    %v337 = vpop.f32.mrb[0].mxu0
    %v338 = vadd.f32 %v269, %v337
    %v339 = vpop.f32.mrb[0].mxu0
    %340 = vdwg.mxu0
    %v341 = vmax.f32 %v338, 0.0
    %v342 = vld [vmem:[#allocation4] sm:$0xff]
    %v343 = vld [vmem:[#allocation4 + $0x8] sm:$0xff]
    %v344 = vld [vmem:[#allocation4 + $0x10] sm:$0xff]
    %v345 = vld [vmem:[#allocation4 + $0x18] sm:$0xff]
    %v346 = vld [vmem:[#allocation4 + $0x20] sm:$0xff]
    %v347 = vld [vmem:[#allocation4 + $0x28] sm:$0xff]
    %v348 = vld [vmem:[#allocation4 + $0x30] sm:$0xff]
    %v349 = vld [vmem:[#allocation4 + $0x38] sm:$0xff]
    %v350 = vld [vmem:[#allocation4 + $0x40] sm:$0xff]
    %v351 = vld [vmem:[#allocation4 + $0x48] sm:$0xff]
    %v352 = vld [vmem:[#allocation4 + $0x50] sm:$0xff]
    %v353 = vld [vmem:[#allocation4 + $0x58] sm:$0xff]
    %v354 = vld [vmem:[#allocation4 + $0x60] sm:$0xff]
    %v355 = vld [vmem:[#allocation4 + $0x68] sm:$0xff]
    %v356 = vld [vmem:[#allocation4 + $0x70] sm:$0xff]
    %v357 = vld [vmem:[#allocation4 + $0x78] sm:$0xff]
    %v358 = vld [vmem:[%s8] sm:$0x1]
    %v360 = vlaneseq
    %v361 = vshrl.u32 %v360, 7
    %v362 = vsub.s32 0, %v361
    %v363 = vrot.slane %v358, %v362
    %365 = vmatprep.subr.mxu0 0.0
    %366 = vmatpush1.msra.mxu0 %v342
    %367 = vmatprep.subr.mxu0 0.0
    %368 = vmatpush1.msra.mxu0 %v343
    %369 = vmatprep.subr.mxu0 0.0
    %370 = vmatpush1.msra.mxu0 %v344
    %371 = vmatprep.subr.mxu0 0.0
    %372 = vmatpush1.msra.mxu0 %v345
    %373 = vmatprep.subr.mxu0 0.0
    %374 = vmatpush1.msra.mxu0 %v346
    %375 = vmatprep.subr.mxu0 0.0
    %376 = vmatpush1.msra.mxu0 %v347
    %377 = vmatprep.subr.mxu0 0.0
    %378 = vmatpush1.msra.mxu0 %v348
    %379 = vmatprep.subr.mxu0 0.0
    %380 = vmatpush1.msra.mxu0 %v349
    %381 = vmatprep.subr.mxu0 0.0
    %382 = vmatpush1.msra.mxu0 %v350
    %383 = vmatprep.subr.mxu0 0.0
    %384 = vmatpush1.msra.mxu0 %v351
    %385 = vmatprep.subr.mxu0 0.0
    %386 = vmatpush1.msra.mxu0 %v352
    %387 = vmatprep.subr.mxu0 0.0
    %388 = vmatpush1.msra.mxu0 %v353
    %389 = vmatprep.subr.mxu0 0.0
    %390 = vmatpush1.msra.mxu0 %v354
    %391 = vmatprep.subr.mxu0 0.0
    %392 = vmatpush1.msra.mxu0 %v355
    %393 = vmatprep.subr.mxu0 0.0
    %394 = vmatpush1.msra.mxu0 %v356
    %395 = vmatprep.subr.mxu0 0.0
    %396 = vmatpush1.msra.mxu0 %v357
    %397 = vmatprep.subr.mxu0 0.0
    %398 = vmatpush1.msra.mxu0 0.0
    %399 = vmatprep.subr.mxu0 0.0
    %400 = vmatpush1.msra.mxu0 0.0
    %401 = vmatprep.subr.mxu0 0.0
    %402 = vmatpush1.msra.mxu0 0.0
    %403 = vmatprep.subr.mxu0 0.0
    %404 = vmatpush1.msra.mxu0 0.0
    %405 = vmatprep.subr.mxu0 0.0
    %406 = vmatpush1.msra.mxu0 0.0
    %407 = vmatprep.subr.mxu0 0.0
    %408 = vmatpush1.msra.mxu0 0.0
    %409 = vmatprep.subr.mxu0 0.0
    %410 = vmatpush1.msra.mxu0 0.0
    %411 = vmatprep.subr.mxu0 0.0
    %412 = vmatpush1.msra.mxu0 0.0
    %413 = vmatprep.subr.mxu0 0.0
    %414 = vmatpush1.msra.mxu0 0.0
    %415 = vmatprep.subr.mxu0 0.0
    %416 = vmatpush1.msra.mxu0 0.0
    %417 = vmatprep.subr.mxu0 0.0
    %418 = vmatpush1.msra.mxu0 0.0
    %419 = vmatprep.subr.mxu0 0.0
    %420 = vmatpush1.msra.mxu0 0.0
    %421 = vmatprep.subr.mxu0 0.0
    %422 = vmatpush1.msra.mxu0 0.0
    %423 = vmatprep.subr.mxu0 0.0
    %424 = vmatpush1.msra.mxu0 0.0
    %425 = vmatprep.subr.mxu0 0.0
    %426 = vmatpush1.msra.mxu0 0.0
    %427 = vmatprep.subr.mxu0 0.0
    %428 = vmatpush1.msra.mxu0 0.0
    %429 = vmatprep.mubr.f32.mxu0 0.0
    %430 = vmatmul.mubr.f32.gmra.mrb[0].mxu0 %v341
    %v431 = vpop.f32.mrb[0].mxu0
    %v432 = vadd.f32 %v363, %v431
    %v433 = vpop.f32.mrb[0].mxu0
    %434 = vdwg.mxu0
    %v435 = vmax.f32 %v432, 0.0
    %v436 = vld [vmem:[%s9] sm:$0xff]
    %v437 = vld [vmem:[%s9 + $0x8] sm:$0xff]
    %v438 = vld [vmem:[%s9 + $0x10] sm:$0xff]
    %v439 = vld [vmem:[%s9 + $0x18] sm:$0xff]
    %v440 = vld [vmem:[%s9 + $0x20] sm:$0xff]
    %v441 = vld [vmem:[%s9 + $0x28] sm:$0xff]
    %v442 = vld [vmem:[%s9 + $0x30] sm:$0xff]
    %v443 = vld [vmem:[%s9 + $0x38] sm:$0xff]
    %v444 = vld [vmem:[%s9 + $0x40] sm:$0xff]
    %v445 = vld [vmem:[%s9 + $0x48] sm:$0xff]
    %v446 = vld [vmem:[%s9 + $0x50] sm:$0xff]
    %v447 = vld [vmem:[%s9 + $0x58] sm:$0xff]
    %v448 = vld [vmem:[%s9 + $0x60] sm:$0xff]
    %v449 = vld [vmem:[%s9 + $0x68] sm:$0xff]
    %v450 = vld [vmem:[%s9 + $0x70] sm:$0xff]
    %v451 = vld [vmem:[%s9 + $0x78] sm:$0xff]
    %v452 = vld [vmem:[%s10] sm:$0x1]
    %v454 = vlaneseq
    %v455 = vshrl.u32 %v454, 7
    %v456 = vsub.s32 0, %v455
    %v457 = vrot.slane %v452, %v456
    %459 = vmatprep.subr.mxu0 0.0
    %460 = vmatpush1.msra.mxu0 %v436
    %461 = vmatprep.subr.mxu0 0.0
    %462 = vmatpush1.msra.mxu0 %v437
    %463 = vmatprep.subr.mxu0 0.0
    %464 = vmatpush1.msra.mxu0 %v438
    %465 = vmatprep.subr.mxu0 0.0
    %466 = vmatpush1.msra.mxu0 %v439
    %467 = vmatprep.subr.mxu0 0.0
    %468 = vmatpush1.msra.mxu0 %v440
    %469 = vmatprep.subr.mxu0 0.0
    %470 = vmatpush1.msra.mxu0 %v441
    %471 = vmatprep.subr.mxu0 0.0
    %472 = vmatpush1.msra.mxu0 %v442
    %473 = vmatprep.subr.mxu0 0.0
    %474 = vmatpush1.msra.mxu0 %v443
    %475 = vmatprep.subr.mxu0 0.0
    %476 = vmatpush1.msra.mxu0 %v444
    %477 = vmatprep.subr.mxu0 0.0
    %478 = vmatpush1.msra.mxu0 %v445
    %479 = vmatprep.subr.mxu0 0.0
    %480 = vmatpush1.msra.mxu0 %v446
    %481 = vmatprep.subr.mxu0 0.0
    %482 = vmatpush1.msra.mxu0 %v447
    %483 = vmatprep.subr.mxu0 0.0
    %484 = vmatpush1.msra.mxu0 %v448
    %485 = vmatprep.subr.mxu0 0.0
    %486 = vmatpush1.msra.mxu0 %v449
    %487 = vmatprep.subr.mxu0 0.0
    %488 = vmatpush1.msra.mxu0 %v450
    %489 = vmatprep.subr.mxu0 0.0
    %490 = vmatpush1.msra.mxu0 %v451
    %491 = vmatprep.subr.mxu0 0.0
    %492 = vmatpush1.msra.mxu0 0.0
    %493 = vmatprep.subr.mxu0 0.0
    %494 = vmatpush1.msra.mxu0 0.0
    %495 = vmatprep.subr.mxu0 0.0
    %496 = vmatpush1.msra.mxu0 0.0
    %497 = vmatprep.subr.mxu0 0.0
    %498 = vmatpush1.msra.mxu0 0.0
    %499 = vmatprep.subr.mxu0 0.0
    %500 = vmatpush1.msra.mxu0 0.0
    %501 = vmatprep.subr.mxu0 0.0
    %502 = vmatpush1.msra.mxu0 0.0
    %503 = vmatprep.subr.mxu0 0.0
    %504 = vmatpush1.msra.mxu0 0.0
    %505 = vmatprep.subr.mxu0 0.0
    %506 = vmatpush1.msra.mxu0 0.0
    %507 = vmatprep.subr.mxu0 0.0
    %508 = vmatpush1.msra.mxu0 0.0
    %509 = vmatprep.subr.mxu0 0.0
    %510 = vmatpush1.msra.mxu0 0.0
    %511 = vmatprep.subr.mxu0 0.0
    %512 = vmatpush1.msra.mxu0 0.0
    %513 = vmatprep.subr.mxu0 0.0
    %514 = vmatpush1.msra.mxu0 0.0
    %515 = vmatprep.subr.mxu0 0.0
    %516 = vmatpush1.msra.mxu0 0.0
    %517 = vmatprep.subr.mxu0 0.0
    %518 = vmatpush1.msra.mxu0 0.0
    %519 = vmatprep.subr.mxu0 0.0
    %520 = vmatpush1.msra.mxu0 0.0
    %521 = vmatprep.subr.mxu0 0.0
    %522 = vmatpush1.msra.mxu0 0.0
    %523 = vmatprep.mubr.f32.mxu0 0.0
    %524 = vmatmul.mubr.f32.gmra.mrb[0].mxu0 %v435
    %v525 = vpop.f32.mrb[0].mxu0
    %v526 = vadd.f32 %v457, %v525
    %v527 = vpop.f32.mrb[0].mxu0
    %528 = vdwg.mxu0
    %530 = vrot.lane.b32.xlu0 %v526, 1
    %v531 = vpop.permute.xlu0 %530
    %v533 = vsub.f32 %v526, %v531
    %v534 = vmax.f32 %v533, 0.0
    %v535 = vand.u32 2147483647, %v533
    %v536 = vsub.f32 0.0, %v535
    %v537 = vmul.f32 %v536, 1.442695
    %v538 = vpow.pop %v537
    %v539 = vadd.f32 %v538, 1.0
    %v540 = vlog2.pop %v539
    %v541 = vmul.f32 %v540, 0.6931472
    %v542 = vmul.f32 -0.5, %v538
    %v543 = vadd.f32 %v542, 1.0
    %v544 = vmul.f32 %v543, %v538
    %v545 = vand.u32 2147483647, %v538
    %vm546 = vcmp.lt.f32.partialorder %v545, 0.0004427343
    %v547 = vsel %vm546, %v544, %v541
    %v548 = vadd.f32 %v534, %v547
    %v549 = vsub.f32 0.0, %v548
    %v550 = vsub.f32 %v533, %v548
    %552 = vrot.lane.b32.xlu0 %v549, 127
    %v553 = vpop.permute.xlu0 %552
    %vm555 = vcmask 7168
    %v556 = vsel %vm555, %v553, %v550
    %vm557 = vcmask 15360
    %558 = vst.msk [vmem:[%s11] sm:$0xff] %vm557, %v556
    // Predicated region
    $region54: #{attack_network_forward.1} parent=1 // pred_check
      _
    $region55: #{attack_network_forward.1} parent=1 // pred_check_branch
      %560 = sbr.rel (0) target = $region57
    $region56: #{attack_network_forward.1} parent=1 // pred_region
      _
    $region57: #{attack_network_forward.1} parent=1 // pred_fallthru
      _
    // Predicated region
    $region58: #{attack_network_forward.1} parent=1 // pred_check
      _
    $region59: #{attack_network_forward.1} parent=1 // pred_check_branch
      %562 = sbr.rel (0) target = $region61
    $region60: #{attack_network_forward.1} parent=1 // pred_region
      _
    $region61: #{attack_network_forward.1} parent=1 // pred_fallthru
      _
    %563 = vsyncpa [#allocation3], 1
    %564 = vsyncpa [#allocation5], 1

</llo_original>
